<compile_context>
chip_gen: v7x
topology: tpu7x:2x2x1
jax: 0.10.0
libtpu: 0.0.40
codegen_flags: <defaults>
</compile_context>

<pallas_src>
import jax
import jax.numpy as jnp
import numpy as np
from jax.experimental import pallas as pl
from jax.experimental.pallas import tpu as pltpu

LANE = 128
SUBLANE = 16          # bf16 sublane packing -> batch tiles are multiples of 16
MAX_TB = 2048         # keeps double-buffered tiles well under every gen's VMEM


def _round_up(x, m):
    return ((x + m - 1) // m) * m


def _batch_tiling(b):
    """Pick (tb, b_pad): tb multiple of 16, <= MAX_TB, minimal row padding, and
    >= 2 grid steps once the batch is large enough for v7x's two TensorCores."""
    b16 = _round_up(max(b, 1), SUBLANE)
    nb = max(1, -(-b16 // MAX_TB))          # ceil-div
    if b16 >= 1024 and nb < 2:
        nb = 2                              # let both v7x cores work
    tb = _round_up(-(-b16 // nb), SUBLANE)
    return tb, nb * tb


# ----------------------------- Pallas kernel --------------------------------

def _critic_mlp_kernel(h1p_ref, b1_ref, w2_ref, b2_ref, w3_ref, b3_ref, o_ref):
    """Layer-1 tail (bias+relu; its matmul was folded into lookup tables) then
    relu(.@W2+b2) and .@W3+b3 for one batch tile.

    Matmul operands are bf16 (full MXU rate) with f32 accumulation; bias add /
    relu stay f32. Hidden/output lanes are padded to 128 by the wrapper
    (padding inert through relu); output is stored bf16 lane-dense."""
    h1 = jnp.maximum(h1p_ref[...] + b1_ref[...], 0.0)                  # [TB, H]  f32
    h1 = h1.astype(jnp.bfloat16)
    h2 = jnp.dot(h1, w2_ref[...], preferred_element_type=jnp.float32) + b2_ref[...]
    h2 = jnp.maximum(h2, 0.0).astype(jnp.bfloat16)                     # [TB, H_P]
    out = jnp.dot(h2, w3_ref[...], preferred_element_type=jnp.float32) + b3_ref[...]
    o_ref[...] = out.astype(o_ref.dtype)                               # [TB, 128] bf16


def critic_mlp(h1_pre, b1, w2, b2, w3, b3, *, tb):
    """h1_pre: [B_pad, H] f32 (B_pad divisible by tb); returns [B_pad, OUT_P] bf16."""
    b_pad, h_in = h1_pre.shape
    h_p = w2.shape[1]
    out_p = w3.shape[1]
    nb = b_pad // tb

    flops = 2 * b_pad * (h_in * h_p + h_p * out_p)
    bytes_accessed = int(
        h1_pre.size * h1_pre.dtype.itemsize
        + sum(int(a.size) * a.dtype.itemsize for a in (b1, w2, b2, w3, b3))
        + b_pad * out_p * 2)

    return pl.pallas_call(
        _critic_mlp_kernel,
        out_shape=jax.ShapeDtypeStruct((b_pad, out_p), jnp.bfloat16),
        grid=(nb,),
        in_specs=[
            pl.BlockSpec((tb, h_in), lambda i: (i, 0)),     # activations: tiled over batch
            pl.BlockSpec((1, h_in), lambda i: (0, 0)),      # weights/biases: VMEM resident
            pl.BlockSpec((h_in, h_p), lambda i: (0, 0)),
            pl.BlockSpec((1, h_p), lambda i: (0, 0)),
            pl.BlockSpec((h_p, out_p), lambda i: (0, 0)),
            pl.BlockSpec((1, out_p), lambda i: (0, 0)),
        ],
        out_specs=pl.BlockSpec((tb, out_p), lambda i: (i, 0)),
        compiler_params=pltpu.CompilerParams(
            dimension_semantics=("parallel",),
            vmem_limit_bytes=32 * 1024 * 1024),
        cost_estimate=pl.CostEstimate(
            flops=flops, transcendentals=0, bytes_accessed=bytes_accessed),
    )(h1_pre, b1, w2, b2, w3, b3)


# --------------------------- jitted full forward ------------------------------

@jax.jit
def _critic_forward(params, states):
    states = states.astype(jnp.int32)
    node_idx = states[:, :-1]                                   # [B, S]
    time_idx = states[:, -1]                                    # [B]
    B, S = node_idx.shape

    # Layer 1 as projected-table lookups (exact f32 equivalent of linear1 on the
    # concatenated embeddings):  h1_pre = sum_k T_node[k, idx_k] + T_time[idx_t]
    slot = jnp.arange(S, dtype=jnp.int32)[None, :]              # [1, S]
    per_slot = params["t_node"][slot, node_idx]                 # [B, S, H]
    h1_pre = per_slot.sum(axis=1) + params["t_time"][time_idx]  # [B, H] f32

    tb, b_pad = _batch_tiling(B)
    h1_pre = jnp.pad(h1_pre, ((0, b_pad - B), (0, 0)))          # single fused pad

    out = critic_mlp(h1_pre, params["b1"], params["w2"], params["b2"],
                     params["w3"], params["b3"], tb=tb)          # [b_pad, 128] bf16
    return out[:B, :1].astype(jnp.float32)                       # [B, 1] f32


# ----------------------------- Module wrapper --------------------------------

class RCriticWithEmbLayerPallas:
    """JAX/Pallas port of R_Critic_With_Emb_Layer (use_augmentation=False)."""

    def __init__(self, key, node_num, defender_num, state_emb_dim,
                 max_time_horizon, hidden_size):
        E = state_emb_dim
        H = hidden_size
        S = defender_num + 1                    # number of node-index slots
        self.cin = E * (defender_num + 2)       # critic_input_dim
        h_p = _round_up(H, LANE)
        out_p = LANE                            # 1 -> padded to 128 (lane-dense store)

        ks = jax.random.split(key, 8)

        def kaiming_uniform(k, fan_in, shape):
            bound = float(np.sqrt(1.0 / fan_in))
            return jax.random.uniform(k, shape, jnp.float32, -bound, bound)

        # f32 reference parameters (layout: [in, out] = transpose of torch weight).
        self.node_emb = kaiming_uniform(ks[0], E, (node_num + 1, E))
        self.time_emb = kaiming_uniform(ks[1], E, (max_time_horizon, E))
        self.w1 = kaiming_uniform(ks[2], self.cin, (self.cin, H))
        self.b1 = kaiming_uniform(ks[3], self.cin, (1, H))
        self.w2 = kaiming_uniform(ks[4], H, (H, H))
        self.b2 = kaiming_uniform(ks[5], H, (1, H))
        self.w3 = kaiming_uniform(ks[6], H, (H, 1))
        self.b3 = kaiming_uniform(ks[7], H, (1, 1))

        # ---- kernel-side parameters -----------------------------------------
        # Layer 1 folded into per-slot projected lookup tables (f32, exact).
        w1_slots = self.w1[:S * E].reshape(S, E, H)                   # [S, E, H]
        t_node = jnp.einsum("ne,seh->snh", self.node_emb, w1_slots)   # [S, N+1, H]
        t_time = self.time_emb @ self.w1[S * E:]                      # [T, H]

        # Lane-dense, zero-padded layer-2/3 parameters (padding inert: b2/W3
        # padded entries are zero, so padded hidden columns stay exactly zero).
        def pad2(a, shape, dtype):
            out = jnp.zeros(shape, dtype)
            return out.at[:a.shape[0], :a.shape[1]].set(a.astype(dtype))

        self.params = {
            "t_node": t_node,                                   # [S, N+1, H] f32
            "t_time": t_time,                                   # [T, H]      f32
            "b1": self.b1,                                      # [1, H]      f32
            "w2": pad2(self.w2, (H, h_p), jnp.bfloat16),        # [H, h_p]
            "b2": pad2(self.b2, (1, h_p), jnp.float32),
            "w3": pad2(self.w3, (h_p, out_p), jnp.bfloat16),    # [h_p, 128]
            "b3": pad2(self.b3, (1, out_p), jnp.float32),
        }

    # -------------------------- forward (Pallas) -----------------------------
    def __call__(self, states, batch=True):
        states = jnp.asarray(states, jnp.int32)
        if not batch:
            states = states[None, :]
        return _critic_forward(self.params, states)             # [B, 1] f32

    # reference (pure jnp, f32, unpadded, direct linear1) for sanity check
    def reference(self, states, batch=True):
        states = jnp.asarray(states, jnp.int32)
        if not batch:
            states = states[None, :]
        node_idx = states[:, :-1]
        time_idx = states[:, -1]
        B = node_idx.shape[0]
        state_emb = jnp.concatenate(
            [self.node_emb[node_idx].reshape(B, -1), self.time_emb[time_idx]],
            axis=1)
        x = jnp.maximum(state_emb @ self.w1 + self.b1, 0.0)
        x = jnp.maximum(x @ self.w2 + self.b2, 0.0)
        return x @ self.w3 + self.b3


# ----------------------------------- main ------------------------------------

if __name__ == "__main__":
    key = jax.random.PRNGKey(0)
    k_params, k_nodes, k_time = jax.random.split(key, 3)

    # Small, module-consistent shapes.
    node_num = 10
    defender_num = 3          # states have defender_num+2 = 5 columns
    state_emb_dim = 8
    max_time_horizon = 16
    hidden_size = 32
    batch = 4

    model = RCriticWithEmbLayerPallas(k_params, node_num, defender_num,
                                      state_emb_dim, max_time_horizon,
                                      hidden_size)

    node_cols = jax.random.randint(k_nodes, (batch, defender_num + 1),
                                   0, node_num + 1, dtype=jnp.int32)
    time_col = jax.random.randint(k_time, (batch, 1),
                                  0, max_time_horizon, dtype=jnp.int32)
    states = jnp.concatenate([node_cols, time_col], axis=1)   # [B, defender_num+2]

    values = jax.block_until_ready(model(states, batch=True))
    ref = jax.block_until_ready(model.reference(states, batch=True))

    assert values.shape == (batch, 1)
    # bf16 layer-2/3 operands and bf16 output store -> ~1e-2 relative deviation.
    np.testing.assert_allclose(np.asarray(values), np.asarray(ref),
                               rtol=2e-2, atol=2e-2)
    print("KERNEL_OK")
</pallas_src>

<mosaic_0001>
module attributes {stable_mosaic.version = 11 : i64} {
  func.func @_critic_mlp_kernel(%arg0: i32, %arg1: memref<16x32xf32, #tpu.memory_space<vmem>>, %arg2: memref<1x32xf32, #tpu.memory_space<vmem>>, %arg3: memref<32x128xbf16, #tpu.memory_space<vmem>>, %arg4: memref<1x128xf32, #tpu.memory_space<vmem>>, %arg5: memref<128x128xbf16, #tpu.memory_space<vmem>>, %arg6: memref<1x128xf32, #tpu.memory_space<vmem>>, %arg7: memref<16x128xbf16, #tpu.memory_space<vmem>>) attributes {dimension_semantics = [#tpu.dimension_semantics<parallel>], iteration_bounds = array<i64: 1>, scalar_prefetch = 0 : i64, scratch_operands = 0 : i64, tpu.core_type = #tpu.core_type<tc>, window_params = [{transform_indices = @transform_0, window_bounds = array<i64: 16, 32>}, {pipeline_mode = #tpu.pipeline_mode<synchronous>, transform_indices = @transform_1, window_bounds = array<i64: 1, 32>}, {pipeline_mode = #tpu.pipeline_mode<synchronous>, transform_indices = @transform_2, window_bounds = array<i64: 32, 128>}, {pipeline_mode = #tpu.pipeline_mode<synchronous>, transform_indices = @transform_3, window_bounds = array<i64: 1, 128>}, {pipeline_mode = #tpu.pipeline_mode<synchronous>, transform_indices = @transform_4, window_bounds = array<i64: 128, 128>}, {pipeline_mode = #tpu.pipeline_mode<synchronous>, transform_indices = @transform_5, window_bounds = array<i64: 1, 128>}, {transform_indices = @transform_6, window_bounds = array<i64: 16, 128>}]} {
    %c0 = arith.constant 0 : index
    %c0_0 = arith.constant 0 : index
    %0 = vector.load %arg1[%c0, %c0_0] : memref<16x32xf32, #tpu.memory_space<vmem>>, vector<16x32xf32>
    %c0_1 = arith.constant 0 : index
    %c0_2 = arith.constant 0 : index
    %1 = vector.load %arg2[%c0_1, %c0_2] : memref<1x32xf32, #tpu.memory_space<vmem>>, vector<1x32xf32>
    %2 = vector.broadcast %1 : vector<1x32xf32> to vector<16x32xf32>
    %3 = arith.addf %0, %2 : vector<16x32xf32>
    %cst = arith.constant 0.000000e+00 : f32
    %4 = vector.broadcast %cst : f32 to vector<16x32xf32>
    %5 = arith.maximumf %3, %4 : vector<16x32xf32>
    %6 = arith.truncf %5 : vector<16x32xf32> to vector<16x32xbf16>
    %c0_3 = arith.constant 0 : index
    %c0_4 = arith.constant 0 : index
    %7 = vector.load %arg3[%c0_3, %c0_4] : memref<32x128xbf16, #tpu.memory_space<vmem>>, vector<32x128xbf16>
    %cst_5 = arith.constant dense<0.000000e+00> : vector<16x128xf32>
    %8 = tpu.matmul %6, %7, %cst_5 {dimension_numbers = #tpu.dot_dimension_numbers<[1], [0], [0], [1], [0, 0, 1, 1], [], []>} : vector<16x32xbf16>, vector<32x128xbf16>, vector<16x128xf32> -> vector<16x128xf32>
    %c0_6 = arith.constant 0 : index
    %c0_7 = arith.constant 0 : index
    %9 = vector.load %arg4[%c0_6, %c0_7] : memref<1x128xf32, #tpu.memory_space<vmem>>, vector<1x128xf32>
    %10 = vector.broadcast %9 : vector<1x128xf32> to vector<16x128xf32>
    %11 = arith.addf %8, %10 : vector<16x128xf32>
    %cst_8 = arith.constant 0.000000e+00 : f32
    %12 = vector.broadcast %cst_8 : f32 to vector<16x128xf32>
    %13 = arith.maximumf %11, %12 : vector<16x128xf32>
    %14 = arith.truncf %13 : vector<16x128xf32> to vector<16x128xbf16>
    %c0_9 = arith.constant 0 : index
    %c0_10 = arith.constant 0 : index
    %15 = vector.load %arg5[%c0_9, %c0_10] : memref<128x128xbf16, #tpu.memory_space<vmem>>, vector<128x128xbf16>
    %cst_11 = arith.constant dense<0.000000e+00> : vector<16x128xf32>
    %16 = tpu.matmul %14, %15, %cst_11 {dimension_numbers = #tpu.dot_dimension_numbers<[1], [0], [0], [1], [0, 0, 1, 1], [], []>} : vector<16x128xbf16>, vector<128x128xbf16>, vector<16x128xf32> -> vector<16x128xf32>
    %c0_12 = arith.constant 0 : index
    %c0_13 = arith.constant 0 : index
    %17 = vector.load %arg6[%c0_12, %c0_13] : memref<1x128xf32, #tpu.memory_space<vmem>>, vector<1x128xf32>
    %18 = vector.broadcast %17 : vector<1x128xf32> to vector<16x128xf32>
    %19 = arith.addf %16, %18 : vector<16x128xf32>
    %20 = arith.truncf %19 : vector<16x128xf32> to vector<16x128xbf16>
    %c0_14 = arith.constant 0 : index
    %c0_15 = arith.constant 0 : index
    %21 = vector.load %arg7[%c0_14, %c0_15] : memref<16x128xbf16, #tpu.memory_space<vmem>>, vector<16x128xbf16>
    tpu.vector_store %arg7[%c0_14, %c0_15], %20 {strides = array<i32>} : memref<16x128xbf16, #tpu.memory_space<vmem>>, vector<16x128xbf16>,
    return
  }
  func.func @transform_0(%arg0: i32) -> (i32, i32) {
    %c0_i32 = arith.constant 0 : i32
    %c0_i32_0 = arith.constant 0 : i32
    return %arg0, %c0_i32 : i32, i32
  }
  func.func @transform_1(%arg0: i32) -> (i32, i32) {
    %c0_i32 = arith.constant 0 : i32
    %c0_i32_0 = arith.constant 0 : i32
    %c0_i32_1 = arith.constant 0 : i32
    return %c0_i32, %c0_i32_0 : i32, i32
  }
  func.func @transform_2(%arg0: i32) -> (i32, i32) {
    %c0_i32 = arith.constant 0 : i32
    %c0_i32_0 = arith.constant 0 : i32
    %c0_i32_1 = arith.constant 0 : i32
    return %c0_i32, %c0_i32_0 : i32, i32
  }
  func.func @transform_3(%arg0: i32) -> (i32, i32) {
    %c0_i32 = arith.constant 0 : i32
    %c0_i32_0 = arith.constant 0 : i32
    %c0_i32_1 = arith.constant 0 : i32
    return %c0_i32, %c0_i32_0 : i32, i32
  }
  func.func @transform_4(%arg0: i32) -> (i32, i32) {
    %c0_i32 = arith.constant 0 : i32
    %c0_i32_0 = arith.constant 0 : i32
    %c0_i32_1 = arith.constant 0 : i32
    return %c0_i32, %c0_i32_0 : i32, i32
  }
  func.func @transform_5(%arg0: i32) -> (i32, i32) {
    %c0_i32 = arith.constant 0 : i32
    %c0_i32_0 = arith.constant 0 : i32
    %c0_i32_1 = arith.constant 0 : i32
    return %c0_i32, %c0_i32_0 : i32, i32
  }
  func.func @transform_6(%arg0: i32) -> (i32, i32) {
    %c0_i32 = arith.constant 0 : i32
    %c0_i32_0 = arith.constant 0 : i32
    return %arg0, %c0_i32 : i32, i32
  }
}

</mosaic_0001>

<llo_original>
// kernel: _critic_forward.1
$region0: #{_critic_forward.1}
  #allocation0 [shape = 'u32[]', space=smem, size = 0x4, offset = 0x4, fixed_abs, tag = 'smem constant byte address 0x4 - core index']
  #allocation1 [shape = 'u32[144,128]{1,0:T(1,128)}', space=vmem, size = 0x12000, scoped, tag = 'internal scratch']
  %s0 = inlined_call_operand.vmem [shape: f32[16,32], index: 0, kind: input, shape index: {}]
  %s1 = inlined_call_operand.vmem [shape: f32[1,32], index: 1, kind: input, shape index: {}]
  %s2 = inlined_call_operand.vmem [shape: bf16[32,128], index: 2, kind: input, shape index: {}]
  %s3 = inlined_call_operand.vmem [shape: f32[1,128], index: 3, kind: input, shape index: {}]
  %s4 = inlined_call_operand.vmem [shape: bf16[128,128], index: 4, kind: input, shape index: {}]
  %s5 = inlined_call_operand.vmem [shape: f32[1,128], index: 5, kind: input, shape index: {}]
  %s6 = inlined_call_operand.vmem [shape: bf16[16,128], index: 6, kind: output, shape index: {}]
  %s7 = sld [smem:[#allocation0]]
  $region34: #{_critic_forward.1} parent=0
    _
  %s9 = ssub.s32 1, %s7
  %s10 = scalar_select 0, %s9, %s7
  // Predicated region
  $region2: #{_critic_forward.1} parent=0 // pred_check
    _
  $region3: #{_critic_forward.1} parent=0 // pred_check_branch
    %12 = sbr.rel (0) target = $region5
  $region4: #{_critic_forward.1} parent=0 // pred_region
    _
  $region5: #{_critic_forward.1} parent=0 // pred_fallthru
    _
  // Predicated region
  $region6: #{_critic_forward.1} parent=0 // pred_check
    _
  $region7: #{_critic_forward.1} parent=0 // pred_check_branch
    %14 = sbr.rel (0) target = $region9
  $region8: #{_critic_forward.1} parent=0 // pred_region
    _
  $region9: #{_critic_forward.1} parent=0 // pred_fallthru
    _
  // Predicated region
  $region10: #{_critic_forward.1} parent=0 // pred_check
    _
  $region11: #{_critic_forward.1} parent=0 // pred_check_branch
    %16 = sbr.rel (0) target = $region13
  $region12: #{_critic_forward.1} parent=0 // pred_region
    _
  $region13: #{_critic_forward.1} parent=0 // pred_fallthru
    _
  // Predicated region
  $region14: #{_critic_forward.1} parent=0 // pred_check
    _
  $region15: #{_critic_forward.1} parent=0 // pred_check_branch
    %18 = sbr.rel (0) target = $region17
  $region16: #{_critic_forward.1} parent=0 // pred_region
    _
  $region17: #{_critic_forward.1} parent=0 // pred_fallthru
    _
  // Predicated region
  $region18: #{_critic_forward.1} parent=0 // pred_check
    _
  $region19: #{_critic_forward.1} parent=0 // pred_check_branch
    %20 = sbr.rel (0) target = $region21
  $region20: #{_critic_forward.1} parent=0 // pred_region
    _
  $region21: #{_critic_forward.1} parent=0 // pred_fallthru
    _
  // Predicated region
  $region22: #{_critic_forward.1} parent=0 // pred_check
    _
  $region23: #{_critic_forward.1} parent=0 // pred_check_branch
    %22 = sbr.rel (0) target = $region25
  $region24: #{_critic_forward.1} parent=0 // pred_region
    _
  $region25: #{_critic_forward.1} parent=0 // pred_fallthru
    _
  %v24 = vld [vmem:[%s0] sm:$0xff]
  %v25 = vld [vmem:[%s0 + $0x8] sm:$0xff]
  %v26 = vld [vmem:[%s1] sm:$0x1]
  %v28 = vlaneseq
  %v29 = vshrl.u32 %v28, 7
  %v30 = vsub.s32 0, %v29
  %v31 = vrot.slane %v26, %v30
  %v33 = vadd.f32 %v24, %v31
  %v34 = vadd.f32 %v25, %v31
  %v35 = vmax.f32 %v33, 0.0
  %v36 = vmax.f32 %v34, 0.0
  %v37 = vpack.c.bf16 %v36, %v35
  %v38 = vld [vmem:[%s2] sm:$0xf]
  %v39 = vld [vmem:[%s2 + $0x4] sm:$0xf]
  %v40 = vld [vmem:[%s2 + $0x8] sm:$0xf]
  %v41 = vld [vmem:[%s2 + $0xc] sm:$0xf]
  %v42 = vld [vmem:[%s3] sm:$0x1]
  %v44 = vlaneseq
  %v45 = vshrl.u32 %v44, 7
  %v46 = vsub.s32 0, %v45
  %v47 = vrot.slane %v42, %v46
  %v53 = vunpack.c.l.b16 %v38
  %v54 = vunpack.c.l.b16 %v39
  %v55 = vunpack.c.l.b16 %v40
  %v56 = vunpack.c.l.b16 %v41
  %v57 = vpack.c.b16 %v54, %v53
  %v58 = vpack.c.b16 %v56, %v55
  %vm61 = vcmask 261120
  %v63 = vsel %vm61, %v37, 0
  %65 = vmatprep.subr.bf16.mxu0 0
  %66 = vmatpush1.bf16.msra.mxu0 %v57
  %67 = vmatprep.subr.bf16.mxu0 0
  %68 = vmatpush1.bf16.msra.mxu0 %v58
  %69 = vmatprep.subr.bf16.mxu0 0
  %70 = vmatpush1.bf16.msra.mxu0 0
  %71 = vmatprep.subr.bf16.mxu0 0
  %72 = vmatpush1.bf16.msra.mxu0 0
  %73 = vmatprep.subr.bf16.mxu0 0
  %74 = vmatpush1.bf16.msra.mxu0 0
  %75 = vmatprep.subr.bf16.mxu0 0
  %76 = vmatpush1.bf16.msra.mxu0 0
  %77 = vmatprep.subr.bf16.mxu0 0
  %78 = vmatpush1.bf16.msra.mxu0 0
  %79 = vmatprep.subr.bf16.mxu0 0
  %80 = vmatpush1.bf16.msra.mxu0 0
  %81 = vmatprep.subr.bf16.mxu0 0
  %82 = vmatpush1.bf16.msra.mxu0 0
  %83 = vmatprep.subr.bf16.mxu0 0
  %84 = vmatpush1.bf16.msra.mxu0 0
  %85 = vmatprep.subr.bf16.mxu0 0
  %86 = vmatpush1.bf16.msra.mxu0 0
  %87 = vmatprep.subr.bf16.mxu0 0
  %88 = vmatpush1.bf16.msra.mxu0 0
  %89 = vmatprep.subr.bf16.mxu0 0
  %90 = vmatpush1.bf16.msra.mxu0 0
  %91 = vmatprep.subr.bf16.mxu0 0
  %92 = vmatpush1.bf16.msra.mxu0 0
  %93 = vmatprep.subr.bf16.mxu0 0
  %94 = vmatpush1.bf16.msra.mxu0 0
  %95 = vmatprep.subr.bf16.mxu0 0
  %96 = vmatpush1.bf16.msra.mxu0 0
  %97 = vmatprep.mubr.bf16.mxu0 0
  %98 = vmatmul.mubr.bf16.gmra.mrb[0].mxu0 %v63
  %v99 = vpop.f32.mrb[0].mxu0
  %v100 = vadd.f32 %v47, %v99
  %v101 = vpop.f32.mrb[0].mxu0
  %v102 = vpop.f32.mrb[0].mxu0
  %v103 = vadd.f32 %v47, %v102
  %v104 = vpop.f32.mrb[0].mxu0
  %105 = vdwg.mxu0
  %v106 = vmax.f32 %v100, 0.0
  %v107 = vmax.f32 %v103, 0.0
  %v108 = vpack.c.bf16 %v107, %v106
  %v109 = vld [vmem:[%s4] sm:$0xf]
  %v110 = vld [vmem:[%s4 + $0x4] sm:$0xf]
  %v111 = vld [vmem:[%s4 + $0x8] sm:$0xf]
  %v112 = vld [vmem:[%s4 + $0xc] sm:$0xf]
  %v113 = vld [vmem:[%s4 + $0x10] sm:$0xf]
  %v114 = vld [vmem:[%s4 + $0x14] sm:$0xf]
  %v115 = vld [vmem:[%s4 + $0x18] sm:$0xf]
  %v116 = vld [vmem:[%s4 + $0x1c] sm:$0xf]
  %v117 = vld [vmem:[%s4 + $0x20] sm:$0xf]
  %v118 = vld [vmem:[%s4 + $0x24] sm:$0xf]
  %v119 = vld [vmem:[%s4 + $0x28] sm:$0xf]
  %v120 = vld [vmem:[%s4 + $0x2c] sm:$0xf]
  %v121 = vld [vmem:[%s4 + $0x30] sm:$0xf]
  %v122 = vld [vmem:[%s4 + $0x34] sm:$0xf]
  %v123 = vld [vmem:[%s4 + $0x38] sm:$0xf]
  %v124 = vld [vmem:[%s4 + $0x3c] sm:$0xf]
  %v125 = vld [vmem:[%s5] sm:$0x1]
  %v127 = vlaneseq
  %v128 = vshrl.u32 %v127, 7
  %v129 = vsub.s32 0, %v128
  %v130 = vrot.slane %v125, %v129
  %v148 = vunpack.c.l.b16 %v109
  %v149 = vunpack.c.l.b16 %v110
  %v150 = vunpack.c.l.b16 %v111
  %v151 = vunpack.c.l.b16 %v112
  %v152 = vunpack.c.l.b16 %v113
  %v153 = vunpack.c.l.b16 %v114
  %v154 = vunpack.c.l.b16 %v115
  %v155 = vunpack.c.l.b16 %v116
  %v156 = vunpack.c.l.b16 %v117
  %v157 = vunpack.c.l.b16 %v118
  %v158 = vunpack.c.l.b16 %v119
  %v159 = vunpack.c.l.b16 %v120
  %v160 = vunpack.c.l.b16 %v121
  %v161 = vunpack.c.l.b16 %v122
  %v162 = vunpack.c.l.b16 %v123
  %v163 = vunpack.c.l.b16 %v124
  %v164 = vpack.c.b16 %v149, %v148
  %v165 = vpack.c.b16 %v151, %v150
  %v166 = vpack.c.b16 %v153, %v152
  %v167 = vpack.c.b16 %v155, %v154
  %v168 = vpack.c.b16 %v157, %v156
  %v169 = vpack.c.b16 %v159, %v158
  %v170 = vpack.c.b16 %v161, %v160
  %v171 = vpack.c.b16 %v163, %v162
  %180 = vmatprep.subr.bf16.mxu0 0
  %181 = vmatpush1.bf16.msra.mxu0 %v164
  %182 = vmatprep.subr.bf16.mxu0 0
  %183 = vmatpush1.bf16.msra.mxu0 %v165
  %184 = vmatprep.subr.bf16.mxu0 0
  %185 = vmatpush1.bf16.msra.mxu0 %v166
  %186 = vmatprep.subr.bf16.mxu0 0
  %187 = vmatpush1.bf16.msra.mxu0 %v167
  %188 = vmatprep.subr.bf16.mxu0 0
  %189 = vmatpush1.bf16.msra.mxu0 %v168
  %190 = vmatprep.subr.bf16.mxu0 0
  %191 = vmatpush1.bf16.msra.mxu0 %v169
  %192 = vmatprep.subr.bf16.mxu0 0
  %193 = vmatpush1.bf16.msra.mxu0 %v170
  %194 = vmatprep.subr.bf16.mxu0 0
  %195 = vmatpush1.bf16.msra.mxu0 %v171
  %196 = vmatprep.subr.bf16.mxu0 0
  %197 = vmatpush1.bf16.msra.mxu0 0
  %198 = vmatprep.subr.bf16.mxu0 0
  %199 = vmatpush1.bf16.msra.mxu0 0
  %200 = vmatprep.subr.bf16.mxu0 0
  %201 = vmatpush1.bf16.msra.mxu0 0
  %202 = vmatprep.subr.bf16.mxu0 0
  %203 = vmatpush1.bf16.msra.mxu0 0
  %204 = vmatprep.subr.bf16.mxu0 0
  %205 = vmatpush1.bf16.msra.mxu0 0
  %206 = vmatprep.subr.bf16.mxu0 0
  %207 = vmatpush1.bf16.msra.mxu0 0
  %208 = vmatprep.subr.bf16.mxu0 0
  %209 = vmatpush1.bf16.msra.mxu0 0
  %210 = vmatprep.subr.bf16.mxu0 0
  %211 = vmatpush1.bf16.msra.mxu0 0
  %212 = vmatprep.mubr.bf16.mxu0 0
  %213 = vmatmul.mubr.bf16.gmra.mrb[0].mxu0 %v108
  %v214 = vpop.f32.mrb[0].mxu0
  %v215 = vadd.f32 %v130, %v214
  %v216 = vpop.f32.mrb[0].mxu0
  %v217 = vpop.f32.mrb[0].mxu0
  %v218 = vadd.f32 %v130, %v217
  %v219 = vpop.f32.mrb[0].mxu0
  %220 = vdwg.mxu0
  %v221 = vpack.c.bf16 %v218, %v215
  %v223 = vunpack.c.l.b16 %v221
  %v224 = vunpack.c.h.b16 %v221
  %v225 = vpack.c.b16 %v223, %v223
  %v226 = vpack.c.b16 %v224, %v224
  %229 = vst [vmem:[%s6] sm:$0xf] %v225
  %230 = vst [vmem:[%s6 + $0x4] sm:$0xf] %v226
  // Predicated region
  $region26: #{_critic_forward.1} parent=0 // pred_check
    _
  $region27: #{_critic_forward.1} parent=0 // pred_check_branch
    %232 = sbr.rel (0) target = $region29
  $region28: #{_critic_forward.1} parent=0 // pred_region
    _
  $region29: #{_critic_forward.1} parent=0 // pred_fallthru
    _
  // Predicated region
  $region30: #{_critic_forward.1} parent=0 // pred_check
    _
  $region31: #{_critic_forward.1} parent=0 // pred_check_branch
    %234 = sbr.rel (0) target = $region33
  $region32: #{_critic_forward.1} parent=0 // pred_region
    _
  $region33: #{_critic_forward.1} parent=0 // pred_fallthru
    _

</llo_original>
